<compile_context>
chip_gen: v7x
topology: tpu7x:2x2x1
jax: 0.10.0
libtpu: 0.0.40
codegen_flags: <defaults>
</compile_context>

<pallas_src>
import functools

import jax
import jax.numpy as jnp
from jax.experimental import pallas as pl
from jax.experimental.pallas import tpu as pltpu


def _round_up(v, m):
    return ((v + m - 1) // m) * m


def _cdiv(a, b):
    return (a + b - 1) // b


def _pad2(a, rows, cols):
    return jnp.pad(a, ((0, rows - a.shape[0]), (0, cols - a.shape[1])))


def _nbytes(a):
    return int(a.size) * jnp.dtype(a.dtype).itemsize


def _vmem_capacity_bytes():
    try:
        return int(pltpu.get_tpu_info().vmem_capacity_bytes)
    except Exception:
        return 64 * 1024 * 1024  # conservative (v7x-sized) fallback


# ---------------------------------------------------------------------------
# Kernel: one token tile, processed one qkv third at a time.
#   q = x @ Wq + b_q + (x @ A_q) @ B_q
#   k = x @ Wk + b_k
#   v = x @ Wv + b_v + (x @ A_v) @ B_v
# ---------------------------------------------------------------------------
def _lora_qkv_kernel(x_ref, wqkv_ref, bqkv_ref, wa_ref, wb_ref, out_ref, *, dim_p):
    x = x_ref[...]                                # (tm, dim_p), compute dtype (bf16)
    out_dt = out_ref.dtype

    # Fused LoRA down-projection for q and v: x @ [A_q | A_v] -> (tm, 2r).
    a = jnp.dot(x, wa_ref[...], preferred_element_type=jnp.float32)
    a = a.astype(wb_ref.dtype)

    # --- q third -------------------------------------------------------------
    q = jnp.dot(x, wqkv_ref[:, :dim_p], preferred_element_type=jnp.float32)
    q += bqkv_ref[:, :dim_p]
    q += jnp.dot(a, wb_ref[:, :dim_p], preferred_element_type=jnp.float32)
    out_ref[:, :dim_p] = q.astype(out_dt)

    # --- k third (no LoRA) ----------------------------------------------------
    k = jnp.dot(x, wqkv_ref[:, dim_p:2 * dim_p], preferred_element_type=jnp.float32)
    out_ref[:, dim_p:2 * dim_p] = (k + bqkv_ref[:, dim_p:2 * dim_p]).astype(out_dt)

    # --- v third ---------------------------------------------------------------
    v = jnp.dot(x, wqkv_ref[:, 2 * dim_p:], preferred_element_type=jnp.float32)
    v += bqkv_ref[:, 2 * dim_p:]
    v += jnp.dot(a, wb_ref[:, dim_p:], preferred_element_type=jnp.float32)
    out_ref[:, 2 * dim_p:] = v.astype(out_dt)


# ---------------------------------------------------------------------------
# One-time weight packing (hoisted out of the per-call path).
# ---------------------------------------------------------------------------
def pack_lora_qkv_weights(w_qkv, b_qkv, w_a_q, w_b_q, w_a_v, w_b_v,
                          *, compute_dtype=jnp.bfloat16):
    """Weights are (in, out) layout, i.e. the transpose of PyTorch Linear.weight."""
    dim = w_qkv.shape[0]
    r = w_a_q.shape[1]
    dim_p = _round_up(dim, 128)
    cdt = compute_dtype

    wq, wk, wv = w_qkv[:, :dim], w_qkv[:, dim:2 * dim], w_qkv[:, 2 * dim:]
    w_qkv_p = jnp.concatenate(
        [_pad2(wq, dim_p, dim_p), _pad2(wk, dim_p, dim_p), _pad2(wv, dim_p, dim_p)],
        axis=1).astype(cdt)                                     # (dim_p, 3*dim_p)

    pad1 = (0, dim_p - dim)
    b_p = jnp.concatenate(
        [jnp.pad(b_qkv[:dim], pad1), jnp.pad(b_qkv[dim:2 * dim], pad1),
         jnp.pad(b_qkv[2 * dim:], pad1)]
    ).reshape(1, 3 * dim_p).astype(jnp.float32)                 # bias stays f32

    # Fused LoRA A: [A_q | A_v] -> (dim_p, 2r)
    w_a = jnp.concatenate([_pad2(w_a_q, dim_p, r), _pad2(w_a_v, dim_p, r)],
                          axis=1).astype(cdt)
    # Block-diagonal LoRA B: (2r, 2*dim_p); lane-aligned halves select q / v.
    zr = jnp.zeros((r, dim_p), dtype=cdt)
    w_b = jnp.concatenate(
        [jnp.concatenate([_pad2(w_b_q, r, dim_p).astype(cdt), zr], axis=1),
         jnp.concatenate([zr, _pad2(w_b_v, r, dim_p).astype(cdt)], axis=1)],
        axis=0)

    return dict(w_qkv=w_qkv_p, b=b_p, w_a=w_a, w_b=w_b,
                dim=dim, dim_p=dim_p, r=r, compute_dtype=cdt)


# ---------------------------------------------------------------------------
# Forward with pre-packed weights.
# ---------------------------------------------------------------------------
def lora_qkv_packed(x, packed, *, tm=None, out_dtype=None):
    B, N, dim = x.shape
    assert dim == packed["dim"]
    dim_p, r = packed["dim_p"], packed["r"]
    cdt = packed["compute_dtype"]
    out_dtype = x.dtype if out_dtype is None else out_dtype

    vmem_phys = _vmem_capacity_bytes()
    if tm is None:
        # Larger token tile when 128 MiB VMEM (v5e/v6e); 256 on 64 MiB parts (v7x).
        tm = 512 if vmem_phys >= 100 * 1024 * 1024 else 256

    M = B * N
    tm_eff = min(tm, _round_up(M, 16))           # multiple of 16 (bf16 sublane-safe)
    # Ensure >=2 grid steps when possible so the "parallel" axis can shard across
    # v7x's two TensorCores (negligible overhead elsewhere).
    if _cdiv(M, tm_eff) < 2:
        half = _round_up(_cdiv(M, 2), 16)
        if 16 <= half < tm_eff:
            tm_eff = half
    M_p = _round_up(M, tm_eff)
    n_steps = M_p // tm_eff

    x2 = jnp.pad(x.reshape(M, dim), ((0, M_p - M), (0, dim_p - dim))).astype(cdt)

    # ---- VMEM budget: x/out double-buffered, weights resident single-buffer ----
    isz = jnp.dtype(cdt).itemsize
    osz = jnp.dtype(out_dtype).itemsize
    act_bytes = 2 * tm_eff * dim_p * isz + 2 * tm_eff * 3 * dim_p * osz
    weight_bytes = (_nbytes(packed["w_qkv"]) + _nbytes(packed["b"])
                    + _nbytes(packed["w_a"]) + _nbytes(packed["w_b"]))
    needed = act_bytes + weight_bytes + (4 << 20)       # + compiler scratch headroom
    cap = min(int(vmem_phys * 0.8), 110 << 20)          # ~51 MiB v7x, ~102 MiB v5e/v6e
    vmem_limit = int(min(max(needed, 32 << 20), cap))

    flops = 2 * M * dim * 3 * dim + 2 * 2 * (M * dim * r + M * r * dim)
    bytes_accessed = (_nbytes(x2) + M_p * 3 * dim_p * osz + weight_bytes)
    cost = pl.CostEstimate(flops=int(flops), transcendentals=0,
                           bytes_accessed=int(bytes_accessed))

    kernel = functools.partial(_lora_qkv_kernel, dim_p=dim_p)
    # Grid-invariant weights: whole array resident in VMEM (no pipelining buffers).
    resident = pl.BlockSpec(memory_space=pltpu.MemorySpace.VMEM)

    out_p = pl.pallas_call(
        kernel,
        out_shape=jax.ShapeDtypeStruct((M_p, 3 * dim_p), out_dtype),
        grid_spec=pltpu.PrefetchScalarGridSpec(
            num_scalar_prefetch=0,
            grid=(n_steps,),
            in_specs=[
                pl.BlockSpec((tm_eff, dim_p), lambda i: (i, 0)),   # x tile (pipelined)
                resident,                                          # W_qkv (invariant)
                resident,                                          # bias
                resident,                                          # [A_q | A_v]
                resident,                                          # blockdiag(B_q, B_v)
            ],
            out_specs=pl.BlockSpec((tm_eff, 3 * dim_p), lambda i: (i, 0)),
        ),
        compiler_params=pltpu.CompilerParams(
            dimension_semantics=("parallel",),
            vmem_limit_bytes=vmem_limit),
        cost_estimate=cost,
    )(x2, packed["w_qkv"], packed["b"], packed["w_a"], packed["w_b"])

    # Strip padding (no-op when dim % 128 == 0 and M % tm_eff == 0).
    if dim_p == dim:
        out = out_p[:M]
    else:
        out = jnp.concatenate(
            [out_p[:M, :dim],
             out_p[:M, dim_p:dim_p + dim],
             out_p[:M, 2 * dim_p:2 * dim_p + dim]], axis=1)
    return out.reshape(B, N, 3 * dim)


def lora_qkv(x, w_qkv, b_qkv, w_a_q, w_b_q, w_a_v, w_b_v, *,
             compute_dtype=jnp.bfloat16, tm=None, out_dtype=None):
    """Convenience wrapper: pack + run (prefer packing once and reusing)."""
    packed = pack_lora_qkv_weights(w_qkv, b_qkv, w_a_q, w_b_q, w_a_v, w_b_v,
                                   compute_dtype=compute_dtype)
    return lora_qkv_packed(x, packed, tm=tm, out_dtype=out_dtype)


if __name__ == "__main__":
    # Small shapes consistent with the module: x (B, N, dim).
    B, N, dim, r = 2, 8, 32, 4

    key = jax.random.PRNGKey(0)
    ks = jax.random.split(key, 7)

    x = jax.random.normal(ks[0], (B, N, dim), dtype=jnp.float32)
    # PyTorch Linear stores W as (out, in); the kernel uses (in, out).
    w_qkv = jax.random.normal(ks[1], (dim, 3 * dim), dtype=jnp.float32) * 0.05
    b_qkv = jax.random.normal(ks[2], (3 * dim,), dtype=jnp.float32) * 0.05
    w_a_q = jax.random.normal(ks[3], (dim, r), dtype=jnp.float32) * 0.05
    w_b_q = jax.random.normal(ks[4], (r, dim), dtype=jnp.float32) * 0.05
    w_a_v = jax.random.normal(ks[5], (dim, r), dtype=jnp.float32) * 0.05
    w_b_v = jax.random.normal(ks[6], (r, dim), dtype=jnp.float32) * 0.05

    # Pack once (hoisted out of the per-call path), then run the kernel.
    packed = pack_lora_qkv_weights(w_qkv, b_qkv, w_a_q, w_b_q, w_a_v, w_b_v,
                                   compute_dtype=jnp.bfloat16)
    out = lora_qkv_packed(x, packed)
    out = jax.block_until_ready(out)

    # Pure-JAX f32 reference (same semantics as the PyTorch forward).
    qkv_ref = jnp.einsum("bnd,de->bne", x, w_qkv) + b_qkv
    new_q = jnp.einsum("bnr,rd->bnd", jnp.einsum("bnd,dr->bnr", x, w_a_q), w_b_q)
    new_v = jnp.einsum("bnr,rd->bnd", jnp.einsum("bnd,dr->bnr", x, w_a_v), w_b_v)
    ref = qkv_ref.at[:, :, :dim].add(new_q).at[:, :, -dim:].add(new_v)

    assert out.shape == (B, N, 3 * dim)
    # bf16 MXU inputs (f32 accumulation) -> relaxed tolerance vs f32 reference.
    assert jnp.allclose(out, ref, atol=2e-2, rtol=2e-2)
    print("KERNEL_OK")
</pallas_src>

<mosaic_0001>
module attributes {stable_mosaic.version = 11 : i64} {
  func.func @_lora_qkv_kernel(%arg0: i32, %arg1: memref<16x128xbf16, #tpu.memory_space<vmem>>, %arg2: memref<128x384xbf16, #tpu.memory_space<vmem>>, %arg3: memref<1x384xf32, #tpu.memory_space<vmem>>, %arg4: memref<128x8xbf16, #tpu.memory_space<vmem>>, %arg5: memref<8x256xbf16, #tpu.memory_space<vmem>>, %arg6: memref<16x384xf32, #tpu.memory_space<vmem>>) attributes {dimension_semantics = [#tpu.dimension_semantics<parallel>], iteration_bounds = array<i64: 1>, scalar_prefetch = 0 : i64, scratch_operands = 0 : i64, tpu.core_type = #tpu.core_type<tc>, window_params = [{transform_indices = @transform_0, window_bounds = array<i64: 16, 128>}, {pipeline_mode = #tpu.pipeline_mode<synchronous>, transform_indices = @transform_1, window_bounds = array<i64: 128, 384>}, {pipeline_mode = #tpu.pipeline_mode<synchronous>, transform_indices = @transform_2, window_bounds = array<i64: 1, 384>}, {pipeline_mode = #tpu.pipeline_mode<synchronous>, transform_indices = @transform_3, window_bounds = array<i64: 128, 8>}, {pipeline_mode = #tpu.pipeline_mode<synchronous>, transform_indices = @transform_4, window_bounds = array<i64: 8, 256>}, {transform_indices = @transform_5, window_bounds = array<i64: 16, 384>}]} {
    %c0 = arith.constant 0 : index
    %c0_0 = arith.constant 0 : index
    %0 = vector.load %arg1[%c0, %c0_0] : memref<16x128xbf16, #tpu.memory_space<vmem>>, vector<16x128xbf16>
    %c0_1 = arith.constant 0 : index
    %c0_2 = arith.constant 0 : index
    %1 = vector.load %arg4[%c0_1, %c0_2] : memref<128x8xbf16, #tpu.memory_space<vmem>>, vector<128x8xbf16>
    %cst = arith.constant dense<0.000000e+00> : vector<16x8xf32>
    %2 = tpu.matmul %0, %1, %cst {dimension_numbers = #tpu.dot_dimension_numbers<[1], [0], [0], [1], [0, 0, 1, 1], [], []>} : vector<16x128xbf16>, vector<128x8xbf16>, vector<16x8xf32> -> vector<16x8xf32>
    %3 = arith.truncf %2 : vector<16x8xf32> to vector<16x8xbf16>
    %c0_3 = arith.constant 0 : index
    %c0_4 = arith.constant 0 : index
    %4 = vector.load %arg2[%c0_3, %c0_4] : memref<128x384xbf16, #tpu.memory_space<vmem>>, vector<128x128xbf16>
    %cst_5 = arith.constant dense<0.000000e+00> : vector<16x128xf32>
    %5 = tpu.matmul %0, %4, %cst_5 {dimension_numbers = #tpu.dot_dimension_numbers<[1], [0], [0], [1], [0, 0, 1, 1], [], []>} : vector<16x128xbf16>, vector<128x128xbf16>, vector<16x128xf32> -> vector<16x128xf32>
    %c0_6 = arith.constant 0 : index
    %c0_7 = arith.constant 0 : index
    %6 = vector.load %arg3[%c0_6, %c0_7] : memref<1x384xf32, #tpu.memory_space<vmem>>, vector<1x128xf32>
    %7 = vector.broadcast %6 : vector<1x128xf32> to vector<16x128xf32>
    %8 = arith.addf %5, %7 : vector<16x128xf32>
    %c0_8 = arith.constant 0 : index
    %c0_9 = arith.constant 0 : index
    %9 = vector.load %arg5[%c0_8, %c0_9] : memref<8x256xbf16, #tpu.memory_space<vmem>>, vector<8x128xbf16>
    %cst_10 = arith.constant dense<0.000000e+00> : vector<16x128xf32>
    %10 = tpu.matmul %3, %9, %cst_10 {dimension_numbers = #tpu.dot_dimension_numbers<[1], [0], [0], [1], [0, 0, 1, 1], [], []>} : vector<16x8xbf16>, vector<8x128xbf16>, vector<16x128xf32> -> vector<16x128xf32>
    %11 = arith.addf %8, %10 : vector<16x128xf32>
    %c0_11 = arith.constant 0 : index
    %c0_12 = arith.constant 0 : index
    %12 = vector.load %arg6[%c0_11, %c0_12] : memref<16x384xf32, #tpu.memory_space<vmem>>, vector<16x128xf32>
    tpu.vector_store %arg6[%c0_11, %c0_12], %11 {strides = array<i32>} : memref<16x384xf32, #tpu.memory_space<vmem>>, vector<16x128xf32>,
    %c0_13 = arith.constant 0 : index
    %c128 = arith.constant 128 : index
    %13 = vector.load %arg2[%c0_13, %c128] : memref<128x384xbf16, #tpu.memory_space<vmem>>, vector<128x128xbf16>
    %cst_14 = arith.constant dense<0.000000e+00> : vector<16x128xf32>
    %14 = tpu.matmul %0, %13, %cst_14 {dimension_numbers = #tpu.dot_dimension_numbers<[1], [0], [0], [1], [0, 0, 1, 1], [], []>} : vector<16x128xbf16>, vector<128x128xbf16>, vector<16x128xf32> -> vector<16x128xf32>
    %c0_15 = arith.constant 0 : index
    %c128_16 = arith.constant 128 : index
    %15 = vector.load %arg3[%c0_15, %c128_16] : memref<1x384xf32, #tpu.memory_space<vmem>>, vector<1x128xf32>
    %16 = vector.broadcast %15 : vector<1x128xf32> to vector<16x128xf32>
    %17 = arith.addf %14, %16 : vector<16x128xf32>
    %c0_17 = arith.constant 0 : index
    %c128_18 = arith.constant 128 : index
    %18 = vector.load %arg6[%c0_17, %c128_18] : memref<16x384xf32, #tpu.memory_space<vmem>>, vector<16x128xf32>
    tpu.vector_store %arg6[%c0_17, %c128_18], %17 {strides = array<i32>} : memref<16x384xf32, #tpu.memory_space<vmem>>, vector<16x128xf32>,
    %c0_19 = arith.constant 0 : index
    %c256 = arith.constant 256 : index
    %19 = vector.load %arg2[%c0_19, %c256] : memref<128x384xbf16, #tpu.memory_space<vmem>>, vector<128x128xbf16>
    %cst_20 = arith.constant dense<0.000000e+00> : vector<16x128xf32>
    %20 = tpu.matmul %0, %19, %cst_20 {dimension_numbers = #tpu.dot_dimension_numbers<[1], [0], [0], [1], [0, 0, 1, 1], [], []>} : vector<16x128xbf16>, vector<128x128xbf16>, vector<16x128xf32> -> vector<16x128xf32>
    %c0_21 = arith.constant 0 : index
    %c256_22 = arith.constant 256 : index
    %21 = vector.load %arg3[%c0_21, %c256_22] : memref<1x384xf32, #tpu.memory_space<vmem>>, vector<1x128xf32>
    %22 = vector.broadcast %21 : vector<1x128xf32> to vector<16x128xf32>
    %23 = arith.addf %20, %22 : vector<16x128xf32>
    %c0_23 = arith.constant 0 : index
    %c128_24 = arith.constant 128 : index
    %24 = vector.load %arg5[%c0_23, %c128_24] : memref<8x256xbf16, #tpu.memory_space<vmem>>, vector<8x128xbf16>
    %cst_25 = arith.constant dense<0.000000e+00> : vector<16x128xf32>
    %25 = tpu.matmul %3, %24, %cst_25 {dimension_numbers = #tpu.dot_dimension_numbers<[1], [0], [0], [1], [0, 0, 1, 1], [], []>} : vector<16x8xbf16>, vector<8x128xbf16>, vector<16x128xf32> -> vector<16x128xf32>
    %26 = arith.addf %23, %25 : vector<16x128xf32>
    %c0_26 = arith.constant 0 : index
    %c256_27 = arith.constant 256 : index
    %27 = vector.load %arg6[%c0_26, %c256_27] : memref<16x384xf32, #tpu.memory_space<vmem>>, vector<16x128xf32>
    tpu.vector_store %arg6[%c0_26, %c256_27], %26 {strides = array<i32>} : memref<16x384xf32, #tpu.memory_space<vmem>>, vector<16x128xf32>,
    return
  }
  func.func @transform_0(%arg0: i32) -> (i32, i32) {
    %c0_i32 = arith.constant 0 : i32
    %c0_i32_0 = arith.constant 0 : i32
    return %arg0, %c0_i32 : i32, i32
  }
  func.func @transform_1(%arg0: i32) -> (i32, i32) {
    %c0_i32 = arith.constant 0 : i32
    %c0_i32_0 = arith.constant 0 : i32
    %c0_i32_1 = arith.constant 0 : i32
    return %c0_i32, %c0_i32_0 : i32, i32
  }
  func.func @transform_2(%arg0: i32) -> (i32, i32) {
    %c0_i32 = arith.constant 0 : i32
    %c0_i32_0 = arith.constant 0 : i32
    %c0_i32_1 = arith.constant 0 : i32
    return %c0_i32, %c0_i32_0 : i32, i32
  }
  func.func @transform_3(%arg0: i32) -> (i32, i32) {
    %c0_i32 = arith.constant 0 : i32
    %c0_i32_0 = arith.constant 0 : i32
    %c0_i32_1 = arith.constant 0 : i32
    return %c0_i32, %c0_i32_0 : i32, i32
  }
  func.func @transform_4(%arg0: i32) -> (i32, i32) {
    %c0_i32 = arith.constant 0 : i32
    %c0_i32_0 = arith.constant 0 : i32
    %c0_i32_1 = arith.constant 0 : i32
    return %c0_i32, %c0_i32_0 : i32, i32
  }
  func.func @transform_5(%arg0: i32) -> (i32, i32) {
    %c0_i32 = arith.constant 0 : i32
    %c0_i32_0 = arith.constant 0 : i32
    return %arg0, %c0_i32 : i32, i32
  }
}

</mosaic_0001>

<llo_original>
// kernel: tpu_custom_call.1
$region0: #{tpu_custom_call.1}
  #allocation0 [shape = 'u32[]', space=smem, size = 0x4, offset = 0x4, fixed_abs, tag = 'smem constant byte address 0x4 - core index']
  #allocation1 [shape = 'u32[144,128]{1,0:T(1,128)}', space=vmem, size = 0x12000, scoped, tag = 'internal scratch']
  %s0 = inlined_call_operand.vmem [shape: bf16[16,128], index: 0, kind: input, shape index: {}]
  %s1 = inlined_call_operand.hbm [shape: bf16[128,384], index: 1, kind: input, shape index: {}]
  %s2 = inlined_call_operand.vmem [shape: f32[1,384], index: 2, kind: input, shape index: {}]
  %s3 = inlined_call_operand.vmem [shape: bf16[128,8], index: 3, kind: input, shape index: {}]
  %s4 = inlined_call_operand.vmem [shape: bf16[8,256], index: 4, kind: input, shape index: {}]
  %s5 = inlined_call_operand.hbm [shape: f32[16,384], index: 5, kind: output, shape index: {}]
  %s6 = sld [smem:[#allocation0]]
  $region34: #{tpu_custom_call.1} parent=0
    _
  %s8 = ssub.s32 1, %s6
  %s9 = scalar_select 0, %s8, %s6
  $region1: #{tpu_custom_call.1} parent=0
    #allocation2 [shape = 'u8[98304]{0}', space=vmem, size = 0x18000, scoped, tag = 'input window, operand 1, single buffered']
    #allocation3 [shape = 's32[1]{0}', space=sflag, size = 0x4, scoped, tag = 'scoped memory for tpu_custom_call.1']
    #allocation4 [shape = 's32[1]{0}', space=sflag, size = 0x4, scoped, tag = 'scoped memory for tpu_custom_call.1']
    #allocation5 [shape = 'u8[24576]{0}', space=vmem, size = 0x6000, scoped, tag = 'output window, operand 0, single buffered']
    %10 = vsyncpa [#allocation3], 0
    %11 = vsyncpa [#allocation4], 0
    // Predicated region
    $region2: #{tpu_custom_call.1} parent=1 // pred_check
      _
    $region3: #{tpu_custom_call.1} parent=1 // pred_check_branch
      %13 = sbr.rel (0) target = $region5
    $region4: #{tpu_custom_call.1} parent=1 // pred_region
      _
    $region5: #{tpu_custom_call.1} parent=1 // pred_fallthru
      _
    // Predicated region
    $region6: #{tpu_custom_call.1} parent=1 // pred_check
      _
    $region7: #{tpu_custom_call.1} parent=1 // pred_check_branch
      %15 = sbr.rel (0) target = $region9
    $region8: #{tpu_custom_call.1} parent=1 // pred_region
      %s17 = ssub.s32 3072, 3072
      %18 = vsyncadd [#allocation3], %s17
      %s19 = sshll.u32 [#allocation2], 4
      %s20 = int_to_ptr.vmem [resolvable:$true] %s19
      %25 = dma.hbm_to_vmem [thread:$0]  %s1, 3072, %s20, [#allocation3], 192, 192, 12
    $region9: #{tpu_custom_call.1} parent=1 // pred_fallthru
      _
    // Predicated region
    $region10: #{tpu_custom_call.1} parent=1 // pred_check
      _
    $region11: #{tpu_custom_call.1} parent=1 // pred_check_branch
      %27 = sbr.rel (0) target = $region13
    $region12: #{tpu_custom_call.1} parent=1 // pred_region
      _
    $region13: #{tpu_custom_call.1} parent=1 // pred_fallthru
      _
    // Predicated region
    $region14: #{tpu_custom_call.1} parent=1 // pred_check
      _
    $region15: #{tpu_custom_call.1} parent=1 // pred_check_branch
      %29 = sbr.rel (0) target = $region17
    $region16: #{tpu_custom_call.1} parent=1 // pred_region
      _
    $region17: #{tpu_custom_call.1} parent=1 // pred_fallthru
      _
    // Predicated region
    $region18: #{tpu_custom_call.1} parent=1 // pred_check
      _
    $region19: #{tpu_custom_call.1} parent=1 // pred_check_branch
      %31 = sbr.rel (0) target = $region21
    $region20: #{tpu_custom_call.1} parent=1 // pred_region
      _
    $region21: #{tpu_custom_call.1} parent=1 // pred_fallthru
      _
    // Predicated region
    $region22: #{tpu_custom_call.1} parent=1 // pred_check
      _
    $region23: #{tpu_custom_call.1} parent=1 // pred_check_branch
      %33 = sbr.rel (0) target = $region25
    $region24: #{tpu_custom_call.1} parent=1 // pred_region
      %34 = dma.done [#allocation3], 3072
    $region25: #{tpu_custom_call.1} parent=1 // pred_fallthru
      _
    %v36 = vld [vmem:[%s0] sm:$0xf]
    %v37 = vld [vmem:[%s0 + $0x4] sm:$0xf]
    %v38 = vld [vmem:[%s3] sm:$0xf]
    %v39 = vld [vmem:[%s3 + $0x4] sm:$0xf]
    %v40 = vld [vmem:[%s3 + $0x8] sm:$0xf]
    %v41 = vld [vmem:[%s3 + $0xc] sm:$0xf]
    %v42 = vld [vmem:[%s3 + $0x10] sm:$0xf]
    %v43 = vld [vmem:[%s3 + $0x14] sm:$0xf]
    %v44 = vld [vmem:[%s3 + $0x18] sm:$0xf]
    %v45 = vld [vmem:[%s3 + $0x1c] sm:$0xf]
    %v46 = vld [vmem:[%s3 + $0x20] sm:$0xf]
    %v47 = vld [vmem:[%s3 + $0x24] sm:$0xf]
    %v48 = vld [vmem:[%s3 + $0x28] sm:$0xf]
    %v49 = vld [vmem:[%s3 + $0x2c] sm:$0xf]
    %v50 = vld [vmem:[%s3 + $0x30] sm:$0xf]
    %v51 = vld [vmem:[%s3 + $0x34] sm:$0xf]
    %v52 = vld [vmem:[%s3 + $0x38] sm:$0xf]
    %v53 = vld [vmem:[%s3 + $0x3c] sm:$0xf]
    %v56 = vunpack.c.l.b16 %v36
    %v57 = vunpack.c.l.b16 %v37
    %v58 = vpack.c.b16 %v57, %v56
    %v76 = vunpack.c.l.b16 %v38
    %v77 = vunpack.c.l.b16 %v39
    %v78 = vunpack.c.l.b16 %v40
    %v79 = vunpack.c.l.b16 %v41
    %v80 = vunpack.c.l.b16 %v42
    %v81 = vunpack.c.l.b16 %v43
    %v82 = vunpack.c.l.b16 %v44
    %v83 = vunpack.c.l.b16 %v45
    %v84 = vunpack.c.l.b16 %v46
    %v85 = vunpack.c.l.b16 %v47
    %v86 = vunpack.c.l.b16 %v48
    %v87 = vunpack.c.l.b16 %v49
    %v88 = vunpack.c.l.b16 %v50
    %v89 = vunpack.c.l.b16 %v51
    %v90 = vunpack.c.l.b16 %v52
    %v91 = vunpack.c.l.b16 %v53
    %v92 = vpack.c.b16 %v77, %v76
    %v93 = vpack.c.b16 %v79, %v78
    %v94 = vpack.c.b16 %v81, %v80
    %v95 = vpack.c.b16 %v83, %v82
    %v96 = vpack.c.b16 %v85, %v84
    %v97 = vpack.c.b16 %v87, %v86
    %v98 = vpack.c.b16 %v89, %v88
    %v99 = vpack.c.b16 %v91, %v90
    %108 = vmatprep.subr.bf16.mxu0 0
    %109 = vmatpush1.bf16.msra.mxu0 %v92
    %110 = vmatprep.subr.bf16.mxu0 0
    %111 = vmatpush1.bf16.msra.mxu0 %v93
    %112 = vmatprep.subr.bf16.mxu0 0
    %113 = vmatpush1.bf16.msra.mxu0 %v94
    %114 = vmatprep.subr.bf16.mxu0 0
    %115 = vmatpush1.bf16.msra.mxu0 %v95
    %116 = vmatprep.subr.bf16.mxu0 0
    %117 = vmatpush1.bf16.msra.mxu0 %v96
    %118 = vmatprep.subr.bf16.mxu0 0
    %119 = vmatpush1.bf16.msra.mxu0 %v97
    %120 = vmatprep.subr.bf16.mxu0 0
    %121 = vmatpush1.bf16.msra.mxu0 %v98
    %122 = vmatprep.subr.bf16.mxu0 0
    %123 = vmatpush1.bf16.msra.mxu0 %v99
    %124 = vmatprep.subr.bf16.mxu0 0
    %125 = vmatpush1.bf16.msra.mxu0 0
    %126 = vmatprep.subr.bf16.mxu0 0
    %127 = vmatpush1.bf16.msra.mxu0 0
    %128 = vmatprep.subr.bf16.mxu0 0
    %129 = vmatpush1.bf16.msra.mxu0 0
    %130 = vmatprep.subr.bf16.mxu0 0
    %131 = vmatpush1.bf16.msra.mxu0 0
    %132 = vmatprep.subr.bf16.mxu0 0
    %133 = vmatpush1.bf16.msra.mxu0 0
    %134 = vmatprep.subr.bf16.mxu0 0
    %135 = vmatpush1.bf16.msra.mxu0 0
    %136 = vmatprep.subr.bf16.mxu0 0
    %137 = vmatpush1.bf16.msra.mxu0 0
    %138 = vmatprep.subr.bf16.mxu0 0
    %139 = vmatpush1.bf16.msra.mxu0 0
    %140 = vmatprep.mubr.bf16.mxu0 0
    %141 = vmatmul.mubr.bf16.gmra.mrb[0].mxu0 %v58
    %v142 = vpop.f32.mrb[0].mxu0
    %v143 = vadd.f32 0.0, %v142
    %v144 = vpop.f32.mrb[0].mxu0
    %v145 = vpop.f32.mrb[0].mxu0
    %v146 = vadd.f32 0.0, %v145
    %v147 = vpop.f32.mrb[0].mxu0
    %148 = vdwg.mxu0
    %v149 = vpack.c.bf16 %v146, %v143
    %v150 = vld [vmem:[#allocation2] sm:$0xf]
    %v151 = vld [vmem:[#allocation2 + $0xc] sm:$0xf]
    %v152 = vld [vmem:[#allocation2 + $0x18] sm:$0xf]
    %v153 = vld [vmem:[#allocation2 + $0x24] sm:$0xf]
    %v154 = vld [vmem:[#allocation2 + $0x30] sm:$0xf]
    %v155 = vld [vmem:[#allocation2 + $0x3c] sm:$0xf]
    %v156 = vld [vmem:[#allocation2 + $0x48] sm:$0xf]
    %v157 = vld [vmem:[#allocation2 + $0x54] sm:$0xf]
    %v158 = vld [vmem:[#allocation2 + $0x60] sm:$0xf]
    %v159 = vld [vmem:[#allocation2 + $0x6c] sm:$0xf]
    %v160 = vld [vmem:[#allocation2 + $0x78] sm:$0xf]
    %v161 = vld [vmem:[#allocation2 + $0x84] sm:$0xf]
    %v162 = vld [vmem:[#allocation2 + $0x90] sm:$0xf]
    %v163 = vld [vmem:[#allocation2 + $0x9c] sm:$0xf]
    %v164 = vld [vmem:[#allocation2 + $0xa8] sm:$0xf]
    %v165 = vld [vmem:[#allocation2 + $0xb4] sm:$0xf]
    %v166 = vld [vmem:[%s2] sm:$0x1]
    %v168 = vlaneseq
    %v169 = vshrl.u32 %v168, 7
    %v170 = vsub.s32 0, %v169
    %v171 = vrot.slane %v166, %v170
    %v189 = vunpack.c.l.b16 %v150
    %v190 = vunpack.c.l.b16 %v151
    %v191 = vunpack.c.l.b16 %v152
    %v192 = vunpack.c.l.b16 %v153
    %v193 = vunpack.c.l.b16 %v154
    %v194 = vunpack.c.l.b16 %v155
    %v195 = vunpack.c.l.b16 %v156
    %v196 = vunpack.c.l.b16 %v157
    %v197 = vunpack.c.l.b16 %v158
    %v198 = vunpack.c.l.b16 %v159
    %v199 = vunpack.c.l.b16 %v160
    %v200 = vunpack.c.l.b16 %v161
    %v201 = vunpack.c.l.b16 %v162
    %v202 = vunpack.c.l.b16 %v163
    %v203 = vunpack.c.l.b16 %v164
    %v204 = vunpack.c.l.b16 %v165
    %v205 = vpack.c.b16 %v190, %v189
    %v206 = vpack.c.b16 %v192, %v191
    %v207 = vpack.c.b16 %v194, %v193
    %v208 = vpack.c.b16 %v196, %v195
    %v209 = vpack.c.b16 %v198, %v197
    %v210 = vpack.c.b16 %v200, %v199
    %v211 = vpack.c.b16 %v202, %v201
    %v212 = vpack.c.b16 %v204, %v203
    %221 = vmatprep.subr.bf16.mxu0 0
    %222 = vmatpush1.bf16.msra.mxu0 %v205
    %223 = vmatprep.subr.bf16.mxu0 0
    %224 = vmatpush1.bf16.msra.mxu0 %v206
    %225 = vmatprep.subr.bf16.mxu0 0
    %226 = vmatpush1.bf16.msra.mxu0 %v207
    %227 = vmatprep.subr.bf16.mxu0 0
    %228 = vmatpush1.bf16.msra.mxu0 %v208
    %229 = vmatprep.subr.bf16.mxu0 0
    %230 = vmatpush1.bf16.msra.mxu0 %v209
    %231 = vmatprep.subr.bf16.mxu0 0
    %232 = vmatpush1.bf16.msra.mxu0 %v210
    %233 = vmatprep.subr.bf16.mxu0 0
    %234 = vmatpush1.bf16.msra.mxu0 %v211
    %235 = vmatprep.subr.bf16.mxu0 0
    %236 = vmatpush1.bf16.msra.mxu0 %v212
    %237 = vmatprep.subr.bf16.mxu0 0
    %238 = vmatpush1.bf16.msra.mxu0 0
    %239 = vmatprep.subr.bf16.mxu0 0
    %240 = vmatpush1.bf16.msra.mxu0 0
    %241 = vmatprep.subr.bf16.mxu0 0
    %242 = vmatpush1.bf16.msra.mxu0 0
    %243 = vmatprep.subr.bf16.mxu0 0
    %244 = vmatpush1.bf16.msra.mxu0 0
    %245 = vmatprep.subr.bf16.mxu0 0
    %246 = vmatpush1.bf16.msra.mxu0 0
    %247 = vmatprep.subr.bf16.mxu0 0
    %248 = vmatpush1.bf16.msra.mxu0 0
    %249 = vmatprep.subr.bf16.mxu0 0
    %250 = vmatpush1.bf16.msra.mxu0 0
    %251 = vmatprep.subr.bf16.mxu0 0
    %252 = vmatpush1.bf16.msra.mxu0 0
    %253 = vmatprep.mubr.bf16.mxu0 0
    %254 = vmatmul.mubr.bf16.gmra.mrb[0].mxu0 %v58
    %v255 = vpop.f32.mrb[0].mxu0
    %v256 = vadd.f32 %v171, %v255
    %v257 = vpop.f32.mrb[0].mxu0
    %v258 = vpop.f32.mrb[0].mxu0
    %v259 = vadd.f32 %v171, %v258
    %v260 = vpop.f32.mrb[0].mxu0
    %261 = vdwg.mxu0
    %v262 = vld [vmem:[%s4] sm:$0xf]
    %vm263 = vcmask 64512
    %v265 = vsel %vm263, %v149, 0
    %vm267 = vcmask 1043456
    %v269 = vsel %vm267, %v262, 0
    %271 = vmatprep.subr.bf16.mxu0 0
    %272 = vmatpush1.bf16.msra.mxu0 %v269
    %273 = vmatprep.subr.bf16.mxu0 0
    %274 = vmatpush1.bf16.msra.mxu0 0
    %275 = vmatprep.subr.bf16.mxu0 0
    %276 = vmatpush1.bf16.msra.mxu0 0
    %277 = vmatprep.subr.bf16.mxu0 0
    %278 = vmatpush1.bf16.msra.mxu0 0
    %279 = vmatprep.subr.bf16.mxu0 0
    %280 = vmatpush1.bf16.msra.mxu0 0
    %281 = vmatprep.subr.bf16.mxu0 0
    %282 = vmatpush1.bf16.msra.mxu0 0
    %283 = vmatprep.subr.bf16.mxu0 0
    %284 = vmatpush1.bf16.msra.mxu0 0
    %285 = vmatprep.subr.bf16.mxu0 0
    %286 = vmatpush1.bf16.msra.mxu0 0
    %287 = vmatprep.subr.bf16.mxu0 0
    %288 = vmatpush1.bf16.msra.mxu0 0
    %289 = vmatprep.subr.bf16.mxu0 0
    %290 = vmatpush1.bf16.msra.mxu0 0
    %291 = vmatprep.subr.bf16.mxu0 0
    %292 = vmatpush1.bf16.msra.mxu0 0
    %293 = vmatprep.subr.bf16.mxu0 0
    %294 = vmatpush1.bf16.msra.mxu0 0
    %295 = vmatprep.subr.bf16.mxu0 0
    %296 = vmatpush1.bf16.msra.mxu0 0
    %297 = vmatprep.subr.bf16.mxu0 0
    %298 = vmatpush1.bf16.msra.mxu0 0
    %299 = vmatprep.subr.bf16.mxu0 0
    %300 = vmatpush1.bf16.msra.mxu0 0
    %301 = vmatprep.subr.bf16.mxu0 0
    %302 = vmatpush1.bf16.msra.mxu0 0
    %303 = vmatprep.mubr.bf16.mxu0 0
    %304 = vmatmul.mubr.bf16.gmra.mrb[0].mxu0 %v265
    %v305 = vpop.f32.mrb[0].mxu0
    %v306 = vadd.f32 0.0, %v305
    %v307 = vpop.f32.mrb[0].mxu0
    %v308 = vpop.f32.mrb[0].mxu0
    %v309 = vadd.f32 0.0, %v308
    %v310 = vpop.f32.mrb[0].mxu0
    %311 = vdwg.mxu0
    %v312 = vadd.f32 %v256, %v306
    %v313 = vadd.f32 %v259, %v309
    %314 = vst [vmem:[#allocation5] sm:$0xff] %v312
    %315 = vst [vmem:[#allocation5 + $0x18] sm:$0xff] %v313
    %v316 = vld [vmem:[#allocation2 + $0x4] sm:$0xf]
    %v317 = vld [vmem:[#allocation2 + $0x10] sm:$0xf]
    %v318 = vld [vmem:[#allocation2 + $0x1c] sm:$0xf]
    %v319 = vld [vmem:[#allocation2 + $0x28] sm:$0xf]
    %v320 = vld [vmem:[#allocation2 + $0x34] sm:$0xf]
    %v321 = vld [vmem:[#allocation2 + $0x40] sm:$0xf]
    %v322 = vld [vmem:[#allocation2 + $0x4c] sm:$0xf]
    %v323 = vld [vmem:[#allocation2 + $0x58] sm:$0xf]
    %v324 = vld [vmem:[#allocation2 + $0x64] sm:$0xf]
    %v325 = vld [vmem:[#allocation2 + $0x70] sm:$0xf]
    %v326 = vld [vmem:[#allocation2 + $0x7c] sm:$0xf]
    %v327 = vld [vmem:[#allocation2 + $0x88] sm:$0xf]
    %v328 = vld [vmem:[#allocation2 + $0x94] sm:$0xf]
    %v329 = vld [vmem:[#allocation2 + $0xa0] sm:$0xf]
    %v330 = vld [vmem:[#allocation2 + $0xac] sm:$0xf]
    %v331 = vld [vmem:[#allocation2 + $0xb8] sm:$0xf]
    %v332 = vld [vmem:[%s2 + $0x1] sm:$0x1]
    %v334 = vlaneseq
    %v335 = vshrl.u32 %v334, 7
    %v336 = vsub.s32 0, %v335
    %v337 = vrot.slane %v332, %v336
    %v355 = vunpack.c.l.b16 %v316
    %v356 = vunpack.c.l.b16 %v317
    %v357 = vunpack.c.l.b16 %v318
    %v358 = vunpack.c.l.b16 %v319
    %v359 = vunpack.c.l.b16 %v320
    %v360 = vunpack.c.l.b16 %v321
    %v361 = vunpack.c.l.b16 %v322
    %v362 = vunpack.c.l.b16 %v323
    %v363 = vunpack.c.l.b16 %v324
    %v364 = vunpack.c.l.b16 %v325
    %v365 = vunpack.c.l.b16 %v326
    %v366 = vunpack.c.l.b16 %v327
    %v367 = vunpack.c.l.b16 %v328
    %v368 = vunpack.c.l.b16 %v329
    %v369 = vunpack.c.l.b16 %v330
    %v370 = vunpack.c.l.b16 %v331
    %v371 = vpack.c.b16 %v356, %v355
    %v372 = vpack.c.b16 %v358, %v357
    %v373 = vpack.c.b16 %v360, %v359
    %v374 = vpack.c.b16 %v362, %v361
    %v375 = vpack.c.b16 %v364, %v363
    %v376 = vpack.c.b16 %v366, %v365
    %v377 = vpack.c.b16 %v368, %v367
    %v378 = vpack.c.b16 %v370, %v369
    %387 = vmatprep.subr.bf16.mxu0 0
    %388 = vmatpush1.bf16.msra.mxu0 %v371
    %389 = vmatprep.subr.bf16.mxu0 0
    %390 = vmatpush1.bf16.msra.mxu0 %v372
    %391 = vmatprep.subr.bf16.mxu0 0
    %392 = vmatpush1.bf16.msra.mxu0 %v373
    %393 = vmatprep.subr.bf16.mxu0 0
    %394 = vmatpush1.bf16.msra.mxu0 %v374
    %395 = vmatprep.subr.bf16.mxu0 0
    %396 = vmatpush1.bf16.msra.mxu0 %v375
    %397 = vmatprep.subr.bf16.mxu0 0
    %398 = vmatpush1.bf16.msra.mxu0 %v376
    %399 = vmatprep.subr.bf16.mxu0 0
    %400 = vmatpush1.bf16.msra.mxu0 %v377
    %401 = vmatprep.subr.bf16.mxu0 0
    %402 = vmatpush1.bf16.msra.mxu0 %v378
    %403 = vmatprep.subr.bf16.mxu0 0
    %404 = vmatpush1.bf16.msra.mxu0 0
    %405 = vmatprep.subr.bf16.mxu0 0
    %406 = vmatpush1.bf16.msra.mxu0 0
    %407 = vmatprep.subr.bf16.mxu0 0
    %408 = vmatpush1.bf16.msra.mxu0 0
    %409 = vmatprep.subr.bf16.mxu0 0
    %410 = vmatpush1.bf16.msra.mxu0 0
    %411 = vmatprep.subr.bf16.mxu0 0
    %412 = vmatpush1.bf16.msra.mxu0 0
    %413 = vmatprep.subr.bf16.mxu0 0
    %414 = vmatpush1.bf16.msra.mxu0 0
    %415 = vmatprep.subr.bf16.mxu0 0
    %416 = vmatpush1.bf16.msra.mxu0 0
    %417 = vmatprep.subr.bf16.mxu0 0
    %418 = vmatpush1.bf16.msra.mxu0 0
    %419 = vmatprep.mubr.bf16.mxu0 0
    %420 = vmatmul.mubr.bf16.gmra.mrb[0].mxu0 %v58
    %v421 = vpop.f32.mrb[0].mxu0
    %v422 = vadd.f32 %v337, %v421
    %v423 = vpop.f32.mrb[0].mxu0
    %v424 = vpop.f32.mrb[0].mxu0
    %v425 = vadd.f32 %v337, %v424
    %v426 = vpop.f32.mrb[0].mxu0
    %427 = vdwg.mxu0
    %428 = vst [vmem:[#allocation5 + $0x8] sm:$0xff] %v422
    %429 = vst [vmem:[#allocation5 + $0x20] sm:$0xff] %v425
    %v430 = vld [vmem:[#allocation2 + $0x8] sm:$0xf]
    %v431 = vld [vmem:[#allocation2 + $0x14] sm:$0xf]
    %v432 = vld [vmem:[#allocation2 + $0x20] sm:$0xf]
    %v433 = vld [vmem:[#allocation2 + $0x2c] sm:$0xf]
    %v434 = vld [vmem:[#allocation2 + $0x38] sm:$0xf]
    %v435 = vld [vmem:[#allocation2 + $0x44] sm:$0xf]
    %v436 = vld [vmem:[#allocation2 + $0x50] sm:$0xf]
    %v437 = vld [vmem:[#allocation2 + $0x5c] sm:$0xf]
    %v438 = vld [vmem:[#allocation2 + $0x68] sm:$0xf]
    %v439 = vld [vmem:[#allocation2 + $0x74] sm:$0xf]
    %v440 = vld [vmem:[#allocation2 + $0x80] sm:$0xf]
    %v441 = vld [vmem:[#allocation2 + $0x8c] sm:$0xf]
    %v442 = vld [vmem:[#allocation2 + $0x98] sm:$0xf]
    %v443 = vld [vmem:[#allocation2 + $0xa4] sm:$0xf]
    %v444 = vld [vmem:[#allocation2 + $0xb0] sm:$0xf]
    %v445 = vld [vmem:[#allocation2 + $0xbc] sm:$0xf]
    %v446 = vld [vmem:[%s2 + $0x2] sm:$0x1]
    %v448 = vlaneseq
    %v449 = vshrl.u32 %v448, 7
    %v450 = vsub.s32 0, %v449
    %v451 = vrot.slane %v446, %v450
    %v469 = vunpack.c.l.b16 %v430
    %v470 = vunpack.c.l.b16 %v431
    %v471 = vunpack.c.l.b16 %v432
    %v472 = vunpack.c.l.b16 %v433
    %v473 = vunpack.c.l.b16 %v434
    %v474 = vunpack.c.l.b16 %v435
    %v475 = vunpack.c.l.b16 %v436
    %v476 = vunpack.c.l.b16 %v437
    %v477 = vunpack.c.l.b16 %v438
    %v478 = vunpack.c.l.b16 %v439
    %v479 = vunpack.c.l.b16 %v440
    %v480 = vunpack.c.l.b16 %v441
    %v481 = vunpack.c.l.b16 %v442
    %v482 = vunpack.c.l.b16 %v443
    %v483 = vunpack.c.l.b16 %v444
    %v484 = vunpack.c.l.b16 %v445
    %v485 = vpack.c.b16 %v470, %v469
    %v486 = vpack.c.b16 %v472, %v471
    %v487 = vpack.c.b16 %v474, %v473
    %v488 = vpack.c.b16 %v476, %v475
    %v489 = vpack.c.b16 %v478, %v477
    %v490 = vpack.c.b16 %v480, %v479
    %v491 = vpack.c.b16 %v482, %v481
    %v492 = vpack.c.b16 %v484, %v483
    %501 = vmatprep.subr.bf16.mxu0 0
    %502 = vmatpush1.bf16.msra.mxu0 %v485
    %503 = vmatprep.subr.bf16.mxu0 0
    %504 = vmatpush1.bf16.msra.mxu0 %v486
    %505 = vmatprep.subr.bf16.mxu0 0
    %506 = vmatpush1.bf16.msra.mxu0 %v487
    %507 = vmatprep.subr.bf16.mxu0 0
    %508 = vmatpush1.bf16.msra.mxu0 %v488
    %509 = vmatprep.subr.bf16.mxu0 0
    %510 = vmatpush1.bf16.msra.mxu0 %v489
    %511 = vmatprep.subr.bf16.mxu0 0
    %512 = vmatpush1.bf16.msra.mxu0 %v490
    %513 = vmatprep.subr.bf16.mxu0 0
    %514 = vmatpush1.bf16.msra.mxu0 %v491
    %515 = vmatprep.subr.bf16.mxu0 0
    %516 = vmatpush1.bf16.msra.mxu0 %v492
    %517 = vmatprep.subr.bf16.mxu0 0
    %518 = vmatpush1.bf16.msra.mxu0 0
    %519 = vmatprep.subr.bf16.mxu0 0
    %520 = vmatpush1.bf16.msra.mxu0 0
    %521 = vmatprep.subr.bf16.mxu0 0
    %522 = vmatpush1.bf16.msra.mxu0 0
    %523 = vmatprep.subr.bf16.mxu0 0
    %524 = vmatpush1.bf16.msra.mxu0 0
    %525 = vmatprep.subr.bf16.mxu0 0
    %526 = vmatpush1.bf16.msra.mxu0 0
    %527 = vmatprep.subr.bf16.mxu0 0
    %528 = vmatpush1.bf16.msra.mxu0 0
    %529 = vmatprep.subr.bf16.mxu0 0
    %530 = vmatpush1.bf16.msra.mxu0 0
    %531 = vmatprep.subr.bf16.mxu0 0
    %532 = vmatpush1.bf16.msra.mxu0 0
    %533 = vmatprep.mubr.bf16.mxu0 0
    %534 = vmatmul.mubr.bf16.gmra.mrb[0].mxu0 %v58
    %v535 = vpop.f32.mrb[0].mxu0
    %v536 = vadd.f32 %v451, %v535
    %v537 = vpop.f32.mrb[0].mxu0
    %v538 = vpop.f32.mrb[0].mxu0
    %v539 = vadd.f32 %v451, %v538
    %v540 = vpop.f32.mrb[0].mxu0
    %541 = vdwg.mxu0
    %v542 = vld [vmem:[%s4 + $0x4] sm:$0xf]
    %v544 = vsel %vm267, %v542, 0
    %546 = vmatprep.subr.bf16.mxu0 0
    %547 = vmatpush1.bf16.msra.mxu0 %v544
    %548 = vmatprep.subr.bf16.mxu0 0
    %549 = vmatpush1.bf16.msra.mxu0 0
    %550 = vmatprep.subr.bf16.mxu0 0
    %551 = vmatpush1.bf16.msra.mxu0 0
    %552 = vmatprep.subr.bf16.mxu0 0
    %553 = vmatpush1.bf16.msra.mxu0 0
    %554 = vmatprep.subr.bf16.mxu0 0
    %555 = vmatpush1.bf16.msra.mxu0 0
    %556 = vmatprep.subr.bf16.mxu0 0
    %557 = vmatpush1.bf16.msra.mxu0 0
    %558 = vmatprep.subr.bf16.mxu0 0
    %559 = vmatpush1.bf16.msra.mxu0 0
    %560 = vmatprep.subr.bf16.mxu0 0
    %561 = vmatpush1.bf16.msra.mxu0 0
    %562 = vmatprep.subr.bf16.mxu0 0
    %563 = vmatpush1.bf16.msra.mxu0 0
    %564 = vmatprep.subr.bf16.mxu0 0
    %565 = vmatpush1.bf16.msra.mxu0 0
    %566 = vmatprep.subr.bf16.mxu0 0
    %567 = vmatpush1.bf16.msra.mxu0 0
    %568 = vmatprep.subr.bf16.mxu0 0
    %569 = vmatpush1.bf16.msra.mxu0 0
    %570 = vmatprep.subr.bf16.mxu0 0
    %571 = vmatpush1.bf16.msra.mxu0 0
    %572 = vmatprep.subr.bf16.mxu0 0
    %573 = vmatpush1.bf16.msra.mxu0 0
    %574 = vmatprep.subr.bf16.mxu0 0
    %575 = vmatpush1.bf16.msra.mxu0 0
    %576 = vmatprep.subr.bf16.mxu0 0
    %577 = vmatpush1.bf16.msra.mxu0 0
    %578 = vmatprep.mubr.bf16.mxu0 0
    %579 = vmatmul.mubr.bf16.gmra.mrb[0].mxu0 %v265
    %v580 = vpop.f32.mrb[0].mxu0
    %v581 = vadd.f32 0.0, %v580
    %v582 = vpop.f32.mrb[0].mxu0
    %v583 = vpop.f32.mrb[0].mxu0
    %v584 = vadd.f32 0.0, %v583
    %v585 = vpop.f32.mrb[0].mxu0
    %586 = vdwg.mxu0
    %v587 = vadd.f32 %v536, %v581
    %v588 = vadd.f32 %v539, %v584
    %589 = vst [vmem:[#allocation5 + $0x10] sm:$0xff] %v587
    %590 = vst [vmem:[#allocation5 + $0x28] sm:$0xff] %v588
    // Predicated region
    $region26: #{tpu_custom_call.1} parent=1 // pred_check
      _
    $region27: #{tpu_custom_call.1} parent=1 // pred_check_branch
      %592 = sbr.rel (0) target = $region29
    $region28: #{tpu_custom_call.1} parent=1 // pred_region
      %s594 = ssub.s32 768, 768
      %595 = vsyncadd [#allocation4], %s594
      %s596 = sshll.u32 [#allocation5], 4
      %s597 = int_to_ptr.vmem [resolvable:$true] %s596
      %602 = dma.vmem_to_hbm [thread:$0]  %s597, 768, %s5, [#allocation4], 384, 384, 24
    $region29: #{tpu_custom_call.1} parent=1 // pred_fallthru
      _
    // Predicated region
    $region30: #{tpu_custom_call.1} parent=1 // pred_check
      _
    $region31: #{tpu_custom_call.1} parent=1 // pred_check_branch
      %604 = sbr.rel (0) target = $region33
    $region32: #{tpu_custom_call.1} parent=1 // pred_region
      %605 = dma.done [#allocation4], 768
    $region33: #{tpu_custom_call.1} parent=1 // pred_fallthru
      _
    %606 = vsyncpa [#allocation3], 1
    %607 = vsyncpa [#allocation4], 1

</llo_original>
